<compile_context>
chip_gen: v7x
topology: tpu7x:2x2x1
jax: 0.10.0
libtpu: 0.0.40
codegen_flags: <defaults>
</compile_context>

<pallas_src>
import jax
import jax.numpy as jnp
import numpy as np
from jax.experimental import pallas as pl
from jax.experimental.pallas import tpu as pltpu

DIS_NUM = 4                  # conv kernel height
C_IN = 3                     # conv input channels
H_OUT = 201                  # conv output height (forces the view(-1, 201))
H_IN = H_OUT + DIS_NUM - 1   # 204 = input height
D_IN = C_IN * H_IN           # 612 = flattened (conv-folded) feature width
HIDDEN = 512
N_CLASSES = 2


def classify_kernel(x_ref, w1_ref, b1_ref, w2r_ref, d_ref):
    # x_ref  : (N_TILE, 612)  compute dtype (bf16 default / f32 verification)
    # w1_ref : (612, 512)     compute dtype  -- conv folded into fc1
    # b1_ref : (1, 512)       f32            -- conv bias folded in
    # w2r_ref: (1, 512)       f32            -- fc2 weight diff row (class1 - class0)
    # d_ref  : (N_TILE, 1)    f32            -- d = z1 - z0 (bias diff added in wrapper)
    a = jnp.dot(x_ref[...], w1_ref[...], preferred_element_type=jnp.float32)
    a = jnp.maximum(a + b1_ref[...], 0.0)                     # fc1 + ReLU (f32, VPU)
    # 2-class fc2 reduced to a single class-difference dot product, executed on
    # the VPU (broadcast multiply) + XLU (lane reduction) instead of an N=1 MXU
    # matmul -- the MXU slot stays dedicated to the big GEMM above.
    d_ref[...] = jnp.sum(a * w2r_ref[...], axis=-1, keepdims=True)


def _fold_params(params, compute_dtype):
    """Fold conv2d(3->1,(DIS_NUM,1)) + fc1 into one (612,512) weight, and fc2
    into a single class-difference row."""
    conv_w, conv_b, fc1_w, fc1_b, fc2_w, fc2_b = params
    #   h[n,i] = conv_b + sum_{c,k} x[n,c,i+k] * cw[c,k]
    #   a[n,o] = sum_i h[n,i] * fc1_w[i,o] + fc1_b[o]
    #          = sum_{c,j} x[n,c,j] * W_eff[c*H_IN + j, o] + b_eff[o]
    w_eff = jnp.zeros((C_IN, H_IN, HIDDEN), jnp.float32)
    for c in range(C_IN):
        for k in range(DIS_NUM):
            w_eff = w_eff.at[c, k:k + H_OUT, :].add(conv_w[c, k] * fc1_w)
    w_eff = w_eff.reshape(D_IN, HIDDEN).astype(compute_dtype)
    b_eff = (fc1_b + conv_b[0, 0] * jnp.sum(fc1_w, axis=0, keepdims=True)
             ).astype(jnp.float32)
    w2r = (fc2_w[:, 1] - fc2_w[:, 0]).reshape(1, HIDDEN).astype(jnp.float32)  # (1,512)
    b2d = (fc2_b[0, 1] - fc2_b[0, 0]).reshape(1).astype(jnp.float32)          # (1,)
    return w_eff, b_eff, w2r, b2d


def classify_network(x_nchw, params, *, compute_dtype=jnp.bfloat16, n_tile_max=2048):
    """x_nchw: (N, 3, H_IN, 1) float32  ->  (N, 2) log-probabilities (f32)."""
    n = x_nchw.shape[0]
    w_eff, b_eff, w2r, b2d = _fold_params(params, compute_dtype)

    # NCHW with W == 1: flatten (C, H) -> 612 lanes. x[n, c*H_IN + h] = x[n,c,h,0]
    x = x_nchw.reshape(n, D_IN).astype(compute_dtype)

    # Batch tile: multiple of 8 sublanes; capped at ceil(N/2) so the "parallel"
    # grid axis has >=2 steps and both v7x TensorCores get work (negligible cost
    # on single-TC v5e/v6e); also capped by n_tile_max for VMEM budgeting.
    half = ((pl.cdiv(n, 2) + 7) // 8) * 8
    n_tile = max(8, (min(n_tile_max, half) // 8) * 8)
    n_pad = pl.cdiv(n, n_tile) * n_tile
    if n_pad != n:
        x = jnp.pad(x, ((0, n_pad - n), (0, 0)))   # zero rows -> finite outputs

    itemsize = jnp.dtype(compute_dtype).itemsize
    cost = pl.CostEstimate(
        flops=2 * n_pad * D_IN * HIDDEN + 2 * n_pad * HIDDEN,
        transcendentals=0,
        bytes_accessed=(n_pad * D_IN * itemsize          # streamed x
                        + D_IN * HIDDEN * itemsize       # resident W_eff
                        + 2 * HIDDEN * 4                 # b_eff + w2r
                        + n_pad * 4))                    # d output

    d = pl.pallas_call(
        classify_kernel,
        out_shape=jax.ShapeDtypeStruct((n_pad, 1), jnp.float32),
        grid=(n_pad // n_tile,),
        in_specs=[
            pl.BlockSpec((n_tile, D_IN), lambda i: (i, 0)),    # x: streamed per tile
            pl.BlockSpec((D_IN, HIDDEN), lambda i: (0, 0)),    # W_eff: VMEM resident
            pl.BlockSpec((1, HIDDEN), lambda i: (0, 0)),       # b_eff: VMEM resident
            pl.BlockSpec((1, HIDDEN), lambda i: (0, 0)),       # fc2 diff row: resident
        ],
        out_specs=pl.BlockSpec((n_tile, 1), lambda i: (i, 0)),
        compiler_params=pltpu.CompilerParams(
            dimension_semantics=("parallel",),
            vmem_limit_bytes=32 * 1024 * 1024),
        cost_estimate=cost,
    )(x, w_eff, b_eff, w2r)

    # 2-class log-softmax tail in the XLA wrapper (depends only on d = z1 - z0):
    #   [log p0, log p1] = [-softplus(d), d - softplus(d)]   (numerically stable)
    d = d[:n] + b2d
    sp = jnp.maximum(d, 0.0) + jnp.log1p(jnp.exp(-jnp.abs(d)))
    return jnp.concatenate([-sp, d - sp], axis=1)


def init_params(key):
    k1, k2, k3, k4, k5, k6 = jax.random.split(key, 6)
    # PyTorch shapes: conv1.weight (1, 3, dis_num, 1) -> stored as (3, dis_num)
    conv_w = 0.05 * jax.random.normal(k1, (C_IN, DIS_NUM), jnp.float32)
    conv_b = 0.05 * jax.random.normal(k2, (1, 1), jnp.float32)
    # fc1.weight (512, 201) -> stored transposed (201, 512); bias (1, 512)
    fc1_w = 0.05 * jax.random.normal(k3, (H_OUT, HIDDEN), jnp.float32)
    fc1_b = 0.05 * jax.random.normal(k4, (1, HIDDEN), jnp.float32)
    # fc2.weight (2, 512) -> stored transposed (512, 2); bias (1, 2)
    fc2_w = 0.05 * jax.random.normal(k5, (HIDDEN, N_CLASSES), jnp.float32)
    fc2_b = 0.05 * jax.random.normal(k6, (1, N_CLASSES), jnp.float32)
    return conv_w, conv_b, fc1_w, fc1_b, fc2_w, fc2_b


def reference_forward(x_nchw, params):
    """Pure-JAX reference mirroring the PyTorch forward (un-fused, for checks)."""
    conv_w, conv_b, fc1_w, fc1_b, fc2_w, fc2_b = params
    w4d = conv_w.reshape(1, C_IN, DIS_NUM, 1)                 # OIHW
    y = jax.lax.conv_general_dilated(
        x_nchw, w4d, window_strides=(1, 1), padding="VALID",
        dimension_numbers=("NCHW", "OIHW", "NCHW")) + conv_b[0, 0]
    h = y.reshape(-1, H_OUT)
    a = jax.nn.relu(h @ fc1_w + fc1_b)
    z = a.reshape(-1, HIDDEN) @ fc2_w + fc2_b
    return jax.nn.log_softmax(z, axis=1)


if __name__ == "__main__":
    key = jax.random.PRNGKey(0)
    pkey, xkey, xkey2 = jax.random.split(key, 3)
    params = init_params(pkey)

    # Small batch, f32 verification path (tight tolerance) + default bf16 path.
    batch = 2
    x = jax.random.normal(xkey, (batch, C_IN, H_IN, 1), jnp.float32)
    ref = reference_forward(x, params)

    out_f32 = jax.block_until_ready(
        classify_network(x, params, compute_dtype=jnp.float32))
    np.testing.assert_allclose(np.asarray(out_f32), np.asarray(ref),
                               atol=1e-4, rtol=1e-4)
    assert out_f32.shape == (batch, N_CLASSES)

    out_bf16 = jax.block_until_ready(classify_network(x, params))   # bf16 default
    np.testing.assert_allclose(np.asarray(out_bf16), np.asarray(ref),
                               atol=5e-2, rtol=5e-2)

    # Multi-tile grid path (N not divisible by the tile -> padding + slice).
    batch2 = 100
    x2 = jax.random.normal(xkey2, (batch2, C_IN, H_IN, 1), jnp.float32)
    ref2 = reference_forward(x2, params)

    out2_f32 = jax.block_until_ready(
        classify_network(x2, params, compute_dtype=jnp.float32, n_tile_max=32))
    np.testing.assert_allclose(np.asarray(out2_f32), np.asarray(ref2),
                               atol=1e-4, rtol=1e-4)
    assert out2_f32.shape == (batch2, N_CLASSES)

    out2_bf16 = jax.block_until_ready(
        classify_network(x2, params, n_tile_max=32))                 # bf16 default
    np.testing.assert_allclose(np.asarray(out2_bf16), np.asarray(ref2),
                               atol=5e-2, rtol=5e-2)

    print("KERNEL_OK")
</pallas_src>

<mosaic_0001>
module attributes {stable_mosaic.version = 11 : i64} {
  func.func @classify_kernel(%arg0: i32, %arg1: memref<8x612xf32, #tpu.memory_space<vmem>>, %arg2: memref<612x512xf32, #tpu.memory_space<vmem>>, %arg3: memref<1x512xf32, #tpu.memory_space<vmem>>, %arg4: memref<1x512xf32, #tpu.memory_space<vmem>>, %arg5: memref<8x1xf32, #tpu.memory_space<vmem>>) attributes {dimension_semantics = [#tpu.dimension_semantics<parallel>], iteration_bounds = array<i64: 1>, scalar_prefetch = 0 : i64, scratch_operands = 0 : i64, tpu.core_type = #tpu.core_type<tc>, window_params = [{transform_indices = @transform_0, window_bounds = array<i64: 8, 612>}, {pipeline_mode = #tpu.pipeline_mode<synchronous>, transform_indices = @transform_1, window_bounds = array<i64: 612, 512>}, {pipeline_mode = #tpu.pipeline_mode<synchronous>, transform_indices = @transform_2, window_bounds = array<i64: 1, 512>}, {pipeline_mode = #tpu.pipeline_mode<synchronous>, transform_indices = @transform_3, window_bounds = array<i64: 1, 512>}, {transform_indices = @transform_4, window_bounds = array<i64: 8, 1>}]} {
    %c0 = arith.constant 0 : index
    %c0_0 = arith.constant 0 : index
    %0 = vector.load %arg1[%c0, %c0_0] : memref<8x612xf32, #tpu.memory_space<vmem>>, vector<8x612xf32>
    %c0_1 = arith.constant 0 : index
    %c0_2 = arith.constant 0 : index
    %1 = vector.load %arg2[%c0_1, %c0_2] : memref<612x512xf32, #tpu.memory_space<vmem>>, vector<612x512xf32>
    %cst = arith.constant dense<0.000000e+00> : vector<8x512xf32>
    %2 = tpu.matmul %0, %1, %cst {dimension_numbers = #tpu.dot_dimension_numbers<[1], [0], [0], [1], [0, 0, 1, 1], [], []>} : vector<8x612xf32>, vector<612x512xf32>, vector<8x512xf32> -> vector<8x512xf32>
    %c0_3 = arith.constant 0 : index
    %c0_4 = arith.constant 0 : index
    %3 = vector.load %arg3[%c0_3, %c0_4] : memref<1x512xf32, #tpu.memory_space<vmem>>, vector<1x512xf32>
    %4 = vector.broadcast %3 : vector<1x512xf32> to vector<8x512xf32>
    %5 = arith.addf %2, %4 : vector<8x512xf32>
    %cst_5 = arith.constant 0.000000e+00 : f32
    %6 = vector.broadcast %cst_5 : f32 to vector<8x512xf32>
    %7 = arith.maximumf %5, %6 : vector<8x512xf32>
    %c0_6 = arith.constant 0 : index
    %c0_7 = arith.constant 0 : index
    %8 = vector.load %arg4[%c0_6, %c0_7] : memref<1x512xf32, #tpu.memory_space<vmem>>, vector<1x512xf32>
    %9 = vector.broadcast %8 : vector<1x512xf32> to vector<8x512xf32>
    %10 = arith.mulf %7, %9 : vector<8x512xf32>
    %cst_8 = arith.constant dense<0.000000e+00> : vector<8xf32>
    %11 = vector.multi_reduction <add>, %10, %cst_8 [1] : vector<8x512xf32> to vector<8xf32>
    %12 = vector.shape_cast %11 : vector<8xf32> to vector<8x1xf32>
    %c0_9 = arith.constant 0 : index
    %c0_10 = arith.constant 0 : index
    %13 = vector.load %arg5[%c0_9, %c0_10] : memref<8x1xf32, #tpu.memory_space<vmem>>, vector<8x1xf32>
    tpu.vector_store %arg5[%c0_9, %c0_10], %12 {strides = array<i32>} : memref<8x1xf32, #tpu.memory_space<vmem>>, vector<8x1xf32>,
    return
  }
  func.func @transform_0(%arg0: i32) -> (i32, i32) {
    %c0_i32 = arith.constant 0 : i32
    %c0_i32_0 = arith.constant 0 : i32
    return %arg0, %c0_i32 : i32, i32
  }
  func.func @transform_1(%arg0: i32) -> (i32, i32) {
    %c0_i32 = arith.constant 0 : i32
    %c0_i32_0 = arith.constant 0 : i32
    %c0_i32_1 = arith.constant 0 : i32
    return %c0_i32, %c0_i32_0 : i32, i32
  }
  func.func @transform_2(%arg0: i32) -> (i32, i32) {
    %c0_i32 = arith.constant 0 : i32
    %c0_i32_0 = arith.constant 0 : i32
    %c0_i32_1 = arith.constant 0 : i32
    return %c0_i32, %c0_i32_0 : i32, i32
  }
  func.func @transform_3(%arg0: i32) -> (i32, i32) {
    %c0_i32 = arith.constant 0 : i32
    %c0_i32_0 = arith.constant 0 : i32
    %c0_i32_1 = arith.constant 0 : i32
    return %c0_i32, %c0_i32_0 : i32, i32
  }
  func.func @transform_4(%arg0: i32) -> (i32, i32) {
    %c0_i32 = arith.constant 0 : i32
    %c0_i32_0 = arith.constant 0 : i32
    return %arg0, %c0_i32 : i32, i32
  }
}

</mosaic_0001>

<llo_original>
// kernel: tpu_custom_call.1
$region0: #{tpu_custom_call.1}
  #allocation0 [shape = 'u32[]', space=smem, size = 0x4, offset = 0x4, fixed_abs, tag = 'smem constant byte address 0x4 - core index']
  #allocation1 [shape = 'u32[144,128]{1,0:T(1,128)}', space=vmem, size = 0x12000, scoped, tag = 'internal scratch']
  %s0 = inlined_call_operand.hbm [shape: f32[8,612], index: 0, kind: input, shape index: {}]
  %s1 = inlined_call_operand.hbm [shape: f32[612,512], index: 1, kind: input, shape index: {}]
  %s2 = inlined_call_operand.hbm [shape: f32[1,512], index: 2, kind: input, shape index: {}]
  %s3 = inlined_call_operand.hbm [shape: f32[1,512], index: 3, kind: input, shape index: {}]
  %s4 = inlined_call_operand.vmem [shape: f32[8,1], index: 4, kind: output, shape index: {}]
  %s5 = sld [smem:[#allocation0]]
  $region42: #{tpu_custom_call.1} parent=0
    _
  %s7 = ssub.s32 1, %s5
  %s8 = scalar_select 0, %s7, %s5
  $region1: #{tpu_custom_call.1} parent=0
    #allocation2 [shape = 'u8[20480]{0}', space=vmem, size = 0x5000, scoped, tag = 'input window, operand 0, single buffered']
    #allocation3 [shape = 's32[1]{0}', space=sflag, size = 0x4, scoped, tag = 'scoped memory for tpu_custom_call.1']
    #allocation4 [shape = 'u8[1261568]{0}', space=vmem, size = 0x134000, scoped, tag = 'input window, operand 1, single buffered']
    #allocation5 [shape = 's32[1]{0}', space=sflag, size = 0x4, scoped, tag = 'scoped memory for tpu_custom_call.1']
    #allocation6 [shape = 'u8[2048]{0}', space=vmem, size = 0x800, scoped, tag = 'input window, operand 2, single buffered']
    #allocation7 [shape = 'u8[2048]{0}', space=vmem, size = 0x800, scoped, tag = 'input window, operand 3, single buffered']
    #allocation8 [shape = 's32[1]{0}', space=sflag, size = 0x4, scoped, tag = 'scoped memory for tpu_custom_call.1']
    %9 = vsyncpa [#allocation3], 0
    %10 = vsyncpa [#allocation5], 0
    %11 = vsyncpa [#allocation8], 0
    // Predicated region
    $region2: #{tpu_custom_call.1} parent=1 // pred_check
      _
    $region3: #{tpu_custom_call.1} parent=1 // pred_check_branch
      %13 = sbr.rel (0) target = $region5
    $region4: #{tpu_custom_call.1} parent=1 // pred_region
      %s15 = ssub.s32 640, 640
      %16 = vsyncadd [#allocation3], %s15
      %s18 = sshll.u32 [#allocation2], 4
      %s19 = int_to_ptr.vmem [resolvable:$true] %s18
      %21 = dma.hbm_to_vmem [thread:$0]  %s0, 640, %s19, [#allocation3]
    $region5: #{tpu_custom_call.1} parent=1 // pred_fallthru
      _
    // Predicated region
    $region6: #{tpu_custom_call.1} parent=1 // pred_check
      _
    $region7: #{tpu_custom_call.1} parent=1 // pred_check_branch
      %23 = sbr.rel (0) target = $region9
    $region8: #{tpu_custom_call.1} parent=1 // pred_region
      %s25 = ssub.s32 39424, 39424
      %26 = vsyncadd [#allocation5], %s25
      %s27 = sshll.u32 [#allocation4], 4
      %s28 = int_to_ptr.vmem [resolvable:$true] %s27
      %33 = dma.hbm_to_vmem [thread:$0]  %s1, 39424, %s28, [#allocation5], 512, 512, 32
    $region9: #{tpu_custom_call.1} parent=1 // pred_fallthru
      _
    // Predicated region
    $region10: #{tpu_custom_call.1} parent=1 // pred_check
      _
    $region11: #{tpu_custom_call.1} parent=1 // pred_check_branch
      %35 = sbr.rel (0) target = $region13
    $region12: #{tpu_custom_call.1} parent=1 // pred_region
      %s37 = ssub.s32 64, 64
      %38 = vsyncadd [#allocation5], %s37
      %s40 = sshll.u32 [#allocation6], 4
      %s41 = int_to_ptr.vmem [resolvable:$true] %s40
      %43 = dma.hbm_to_vmem [thread:$0]  %s2, 64, %s41, [#allocation5]
    $region13: #{tpu_custom_call.1} parent=1 // pred_fallthru
      _
    // Predicated region
    $region14: #{tpu_custom_call.1} parent=1 // pred_check
      _
    $region15: #{tpu_custom_call.1} parent=1 // pred_check_branch
      %45 = sbr.rel (0) target = $region17
    $region16: #{tpu_custom_call.1} parent=1 // pred_region
      %s47 = ssub.s32 64, 64
      %48 = vsyncadd [#allocation8], %s47
      %s50 = sshll.u32 [#allocation7], 4
      %s51 = int_to_ptr.vmem [resolvable:$true] %s50
      %53 = dma.hbm_to_vmem [thread:$0]  %s3, 64, %s51, [#allocation8]
    $region17: #{tpu_custom_call.1} parent=1 // pred_fallthru
      _
    // Predicated region
    $region18: #{tpu_custom_call.1} parent=1 // pred_check
      _
    $region19: #{tpu_custom_call.1} parent=1 // pred_check_branch
      %55 = sbr.rel (0) target = $region21
    $region20: #{tpu_custom_call.1} parent=1 // pred_region
      %56 = dma.done [#allocation3], 640
    $region21: #{tpu_custom_call.1} parent=1 // pred_fallthru
      _
    // Predicated region
    $region22: #{tpu_custom_call.1} parent=1 // pred_check
      _
    $region23: #{tpu_custom_call.1} parent=1 // pred_check_branch
      %58 = sbr.rel (0) target = $region25
    $region24: #{tpu_custom_call.1} parent=1 // pred_region
      %59 = dma.done [#allocation5], 39424
    $region25: #{tpu_custom_call.1} parent=1 // pred_fallthru
      _
    // Predicated region
    $region26: #{tpu_custom_call.1} parent=1 // pred_check
      _
    $region27: #{tpu_custom_call.1} parent=1 // pred_check_branch
      %61 = sbr.rel (0) target = $region29
    $region28: #{tpu_custom_call.1} parent=1 // pred_region
      %62 = dma.done [#allocation5], 64
    $region29: #{tpu_custom_call.1} parent=1 // pred_fallthru
      _
    // Predicated region
    $region30: #{tpu_custom_call.1} parent=1 // pred_check
      _
    $region31: #{tpu_custom_call.1} parent=1 // pred_check_branch
      %64 = sbr.rel (0) target = $region33
    $region32: #{tpu_custom_call.1} parent=1 // pred_region
      %65 = dma.done [#allocation8], 64
    $region33: #{tpu_custom_call.1} parent=1 // pred_fallthru
      _
    %v66 = vld [vmem:[#allocation2] sm:$0xff]
    %v67 = vld [vmem:[#allocation2 + $0x8] sm:$0xff]
    %v68 = vld [vmem:[#allocation2 + $0x10] sm:$0xff]
    %v69 = vld [vmem:[#allocation2 + $0x18] sm:$0xff]
    %v70 = vld [vmem:[#allocation2 + $0x20] sm:$0xff]
    %v71 = vld [vmem:[#allocation4] sm:$0xff]
    %v72 = vld [vmem:[#allocation4 + $0x8] sm:$0xff]
    %v73 = vld [vmem:[#allocation4 + $0x10] sm:$0xff]
    %v74 = vld [vmem:[#allocation4 + $0x18] sm:$0xff]
    %v75 = vld [vmem:[#allocation4 + $0x20] sm:$0xff]
    %v76 = vld [vmem:[#allocation4 + $0x28] sm:$0xff]
    %v77 = vld [vmem:[#allocation4 + $0x30] sm:$0xff]
    %v78 = vld [vmem:[#allocation4 + $0x38] sm:$0xff]
    %v79 = vld [vmem:[#allocation4 + $0x40] sm:$0xff]
    %v80 = vld [vmem:[#allocation4 + $0x48] sm:$0xff]
    %v81 = vld [vmem:[#allocation4 + $0x50] sm:$0xff]
    %v82 = vld [vmem:[#allocation4 + $0x58] sm:$0xff]
    %v83 = vld [vmem:[#allocation4 + $0x60] sm:$0xff]
    %v84 = vld [vmem:[#allocation4 + $0x68] sm:$0xff]
    %v85 = vld [vmem:[#allocation4 + $0x70] sm:$0xff]
    %v86 = vld [vmem:[#allocation4 + $0x78] sm:$0xff]
    %v87 = vld [vmem:[#allocation4 + $0x80] sm:$0xff]
    %v88 = vld [vmem:[#allocation4 + $0x88] sm:$0xff]
    %v89 = vld [vmem:[#allocation4 + $0x90] sm:$0xff]
    %v90 = vld [vmem:[#allocation4 + $0x98] sm:$0xff]
    %v91 = vld [vmem:[#allocation4 + $0xa0] sm:$0xff]
    %v92 = vld [vmem:[#allocation4 + $0xa8] sm:$0xff]
    %v93 = vld [vmem:[#allocation4 + $0xb0] sm:$0xff]
    %v94 = vld [vmem:[#allocation4 + $0xb8] sm:$0xff]
    %v95 = vld [vmem:[#allocation4 + $0xc0] sm:$0xff]
    %v96 = vld [vmem:[#allocation4 + $0xc8] sm:$0xff]
    %v97 = vld [vmem:[#allocation4 + $0xd0] sm:$0xff]
    %v98 = vld [vmem:[#allocation4 + $0xd8] sm:$0xff]
    %v99 = vld [vmem:[#allocation4 + $0xe0] sm:$0xff]
    %v100 = vld [vmem:[#allocation4 + $0xe8] sm:$0xff]
    %v101 = vld [vmem:[#allocation4 + $0xf0] sm:$0xff]
    %v102 = vld [vmem:[#allocation4 + $0xf8] sm:$0xff]
    %v103 = vld [vmem:[#allocation4 + $0x100] sm:$0xff]
    %v104 = vld [vmem:[#allocation4 + $0x108] sm:$0xff]
    %v105 = vld [vmem:[#allocation4 + $0x110] sm:$0xff]
    %v106 = vld [vmem:[#allocation4 + $0x118] sm:$0xff]
    %v107 = vld [vmem:[#allocation4 + $0x120] sm:$0xff]
    %v108 = vld [vmem:[#allocation4 + $0x128] sm:$0xff]
    %v109 = vld [vmem:[#allocation4 + $0x130] sm:$0xff]
    %v110 = vld [vmem:[#allocation4 + $0x138] sm:$0xff]
    %v111 = vld [vmem:[#allocation4 + $0x140] sm:$0xff]
    %v112 = vld [vmem:[#allocation4 + $0x148] sm:$0xff]
    %v113 = vld [vmem:[#allocation4 + $0x150] sm:$0xff]
    %v114 = vld [vmem:[#allocation4 + $0x158] sm:$0xff]
    %v115 = vld [vmem:[#allocation4 + $0x160] sm:$0xff]
    %v116 = vld [vmem:[#allocation4 + $0x168] sm:$0xff]
    %v117 = vld [vmem:[#allocation4 + $0x170] sm:$0xff]
    %v118 = vld [vmem:[#allocation4 + $0x178] sm:$0xff]
    %v119 = vld [vmem:[#allocation4 + $0x180] sm:$0xff]
    %v120 = vld [vmem:[#allocation4 + $0x188] sm:$0xff]
    %v121 = vld [vmem:[#allocation4 + $0x190] sm:$0xff]
    %v122 = vld [vmem:[#allocation4 + $0x198] sm:$0xff]
    %v123 = vld [vmem:[#allocation4 + $0x1a0] sm:$0xff]
    %v124 = vld [vmem:[#allocation4 + $0x1a8] sm:$0xff]
    %v125 = vld [vmem:[#allocation4 + $0x1b0] sm:$0xff]
    %v126 = vld [vmem:[#allocation4 + $0x1b8] sm:$0xff]
    %v127 = vld [vmem:[#allocation4 + $0x1c0] sm:$0xff]
    %v128 = vld [vmem:[#allocation4 + $0x1c8] sm:$0xff]
    %v129 = vld [vmem:[#allocation4 + $0x1d0] sm:$0xff]
    %v130 = vld [vmem:[#allocation4 + $0x1d8] sm:$0xff]
    %v131 = vld [vmem:[#allocation4 + $0x1e0] sm:$0xff]
    %v132 = vld [vmem:[#allocation4 + $0x1e8] sm:$0xff]
    %v133 = vld [vmem:[#allocation4 + $0x1f0] sm:$0xff]
    %v134 = vld [vmem:[#allocation4 + $0x1f8] sm:$0xff]
    %v135 = vld [vmem:[#allocation4 + $0x200] sm:$0xff]
    %v136 = vld [vmem:[#allocation4 + $0x208] sm:$0xff]
    %v137 = vld [vmem:[#allocation4 + $0x210] sm:$0xff]
    %v138 = vld [vmem:[#allocation4 + $0x218] sm:$0xff]
    %v139 = vld [vmem:[#allocation4 + $0x220] sm:$0xff]
    %v140 = vld [vmem:[#allocation4 + $0x228] sm:$0xff]
    %v141 = vld [vmem:[#allocation4 + $0x230] sm:$0xff]
    %v142 = vld [vmem:[#allocation4 + $0x238] sm:$0xff]
    %v143 = vld [vmem:[#allocation4 + $0x240] sm:$0xff]
    %v144 = vld [vmem:[#allocation4 + $0x248] sm:$0xff]
    %v145 = vld [vmem:[#allocation4 + $0x250] sm:$0xff]
    %v146 = vld [vmem:[#allocation4 + $0x258] sm:$0xff]
    %v147 = vld [vmem:[#allocation4 + $0x260] sm:$0xff]
    %v148 = vld [vmem:[#allocation4 + $0x268] sm:$0xff]
    %v149 = vld [vmem:[#allocation4 + $0x270] sm:$0xff]
    %v150 = vld [vmem:[#allocation4 + $0x278] sm:$0xff]
    %v151 = vld [vmem:[#allocation4 + $0x280] sm:$0xff]
    %v152 = vld [vmem:[#allocation4 + $0x288] sm:$0xff]
    %v153 = vld [vmem:[#allocation4 + $0x290] sm:$0xff]
    %v154 = vld [vmem:[#allocation4 + $0x298] sm:$0xff]
    %v155 = vld [vmem:[#allocation4 + $0x2a0] sm:$0xff]
    %v156 = vld [vmem:[#allocation4 + $0x2a8] sm:$0xff]
    %v157 = vld [vmem:[#allocation4 + $0x2b0] sm:$0xff]
    %v158 = vld [vmem:[#allocation4 + $0x2b8] sm:$0xff]
    %v159 = vld [vmem:[#allocation4 + $0x2c0] sm:$0xff]
    %v160 = vld [vmem:[#allocation4 + $0x2c8] sm:$0xff]
    %v161 = vld [vmem:[#allocation4 + $0x2d0] sm:$0xff]
    %v162 = vld [vmem:[#allocation4 + $0x2d8] sm:$0xff]
    %v163 = vld [vmem:[#allocation4 + $0x2e0] sm:$0xff]
    %v164 = vld [vmem:[#allocation4 + $0x2e8] sm:$0xff]
    %v165 = vld [vmem:[#allocation4 + $0x2f0] sm:$0xff]
    %v166 = vld [vmem:[#allocation4 + $0x2f8] sm:$0xff]
    %v167 = vld [vmem:[#allocation4 + $0x300] sm:$0xff]
    %v168 = vld [vmem:[#allocation4 + $0x308] sm:$0xff]
    %v169 = vld [vmem:[#allocation4 + $0x310] sm:$0xff]
    %v170 = vld [vmem:[#allocation4 + $0x318] sm:$0xff]
    %v171 = vld [vmem:[#allocation4 + $0x320] sm:$0xff]
    %v172 = vld [vmem:[#allocation4 + $0x328] sm:$0xff]
    %v173 = vld [vmem:[#allocation4 + $0x330] sm:$0xff]
    %v174 = vld [vmem:[#allocation4 + $0x338] sm:$0xff]
    %v175 = vld [vmem:[#allocation4 + $0x340] sm:$0xff]
    %v176 = vld [vmem:[#allocation4 + $0x348] sm:$0xff]
    %v177 = vld [vmem:[#allocation4 + $0x350] sm:$0xff]
    %v178 = vld [vmem:[#allocation4 + $0x358] sm:$0xff]
    %v179 = vld [vmem:[#allocation4 + $0x360] sm:$0xff]
    %v180 = vld [vmem:[#allocation4 + $0x368] sm:$0xff]
    %v181 = vld [vmem:[#allocation4 + $0x370] sm:$0xff]
    %v182 = vld [vmem:[#allocation4 + $0x378] sm:$0xff]
    %v183 = vld [vmem:[#allocation4 + $0x380] sm:$0xff]
    %v184 = vld [vmem:[#allocation4 + $0x388] sm:$0xff]
    %v185 = vld [vmem:[#allocation4 + $0x390] sm:$0xff]
    %v186 = vld [vmem:[#allocation4 + $0x398] sm:$0xff]
    %v187 = vld [vmem:[#allocation4 + $0x3a0] sm:$0xff]
    %v188 = vld [vmem:[#allocation4 + $0x3a8] sm:$0xff]
    %v189 = vld [vmem:[#allocation4 + $0x3b0] sm:$0xff]
    %v190 = vld [vmem:[#allocation4 + $0x3b8] sm:$0xff]
    %v191 = vld [vmem:[#allocation4 + $0x3c0] sm:$0xff]
    %v192 = vld [vmem:[#allocation4 + $0x3c8] sm:$0xff]
    %v193 = vld [vmem:[#allocation4 + $0x3d0] sm:$0xff]
    %v194 = vld [vmem:[#allocation4 + $0x3d8] sm:$0xff]
    %v195 = vld [vmem:[#allocation4 + $0x3e0] sm:$0xff]
    %v196 = vld [vmem:[#allocation4 + $0x3e8] sm:$0xff]
    %v197 = vld [vmem:[#allocation4 + $0x3f0] sm:$0xff]
    %v198 = vld [vmem:[#allocation4 + $0x3f8] sm:$0xff]
    %v199 = vld [vmem:[#allocation4 + $0x400] sm:$0xff]
    %v200 = vld [vmem:[#allocation4 + $0x408] sm:$0xff]
    %v201 = vld [vmem:[#allocation4 + $0x410] sm:$0xff]
    %v202 = vld [vmem:[#allocation4 + $0x418] sm:$0xff]
    %v203 = vld [vmem:[#allocation4 + $0x420] sm:$0xff]
    %v204 = vld [vmem:[#allocation4 + $0x428] sm:$0xff]
    %v205 = vld [vmem:[#allocation4 + $0x430] sm:$0xff]
    %v206 = vld [vmem:[#allocation4 + $0x438] sm:$0xff]
    %v207 = vld [vmem:[#allocation4 + $0x440] sm:$0xff]
    %v208 = vld [vmem:[#allocation4 + $0x448] sm:$0xff]
    %v209 = vld [vmem:[#allocation4 + $0x450] sm:$0xff]
    %v210 = vld [vmem:[#allocation4 + $0x458] sm:$0xff]
    %v211 = vld [vmem:[#allocation4 + $0x460] sm:$0xff]
    %v212 = vld [vmem:[#allocation4 + $0x468] sm:$0xff]
    %v213 = vld [vmem:[#allocation4 + $0x470] sm:$0xff]
    %v214 = vld [vmem:[#allocation4 + $0x478] sm:$0xff]
    %v215 = vld [vmem:[#allocation4 + $0x480] sm:$0xff]
    %v216 = vld [vmem:[#allocation4 + $0x488] sm:$0xff]
    %v217 = vld [vmem:[#allocation4 + $0x490] sm:$0xff]
    %v218 = vld [vmem:[#allocation4 + $0x498] sm:$0xff]
    %v219 = vld [vmem:[#allocation4 + $0x4a0] sm:$0xff]
    %v220 = vld [vmem:[#allocation4 + $0x4a8] sm:$0xff]
    %v221 = vld [vmem:[#allocation4 + $0x4b0] sm:$0xff]
    %v222 = vld [vmem:[#allocation4 + $0x4b8] sm:$0xff]
    %v223 = vld [vmem:[#allocation4 + $0x4c0] sm:$0xff]
    %v224 = vld [vmem:[#allocation4 + $0x4c8] sm:$0xff]
    %v225 = vld [vmem:[#allocation4 + $0x4d0] sm:$0xff]
    %v226 = vld [vmem:[#allocation4 + $0x4d8] sm:$0xff]
    %v227 = vld [vmem:[#allocation4 + $0x4e0] sm:$0xff]
    %v228 = vld [vmem:[#allocation4 + $0x4e8] sm:$0xff]
    %v229 = vld [vmem:[#allocation4 + $0x4f0] sm:$0xff]
    %v230 = vld [vmem:[#allocation4 + $0x4f8] sm:$0xff]
    %v231 = vld [vmem:[#allocation4 + $0x500] sm:$0xff]
    %v232 = vld [vmem:[#allocation4 + $0x508] sm:$0xff]
    %v233 = vld [vmem:[#allocation4 + $0x510] sm:$0xff]
    %v234 = vld [vmem:[#allocation4 + $0x518] sm:$0xff]
    %v235 = vld [vmem:[#allocation4 + $0x520] sm:$0xff]
    %v236 = vld [vmem:[#allocation4 + $0x528] sm:$0xff]
    %v237 = vld [vmem:[#allocation4 + $0x530] sm:$0xff]
    %v238 = vld [vmem:[#allocation4 + $0x538] sm:$0xff]
    %v239 = vld [vmem:[#allocation4 + $0x540] sm:$0xff]
    %v240 = vld [vmem:[#allocation4 + $0x548] sm:$0xff]
    %v241 = vld [vmem:[#allocation4 + $0x550] sm:$0xff]
    %v242 = vld [vmem:[#allocation4 + $0x558] sm:$0xff]
    %v243 = vld [vmem:[#allocation4 + $0x560] sm:$0xff]
    %v244 = vld [vmem:[#allocation4 + $0x568] sm:$0xff]
    %v245 = vld [vmem:[#allocation4 + $0x570] sm:$0xff]
    %v246 = vld [vmem:[#allocation4 + $0x578] sm:$0xff]
    %v247 = vld [vmem:[#allocation4 + $0x580] sm:$0xff]
    %v248 = vld [vmem:[#allocation4 + $0x588] sm:$0xff]
    %v249 = vld [vmem:[#allocation4 + $0x590] sm:$0xff]
    %v250 = vld [vmem:[#allocation4 + $0x598] sm:$0xff]
    %v251 = vld [vmem:[#allocation4 + $0x5a0] sm:$0xff]
    %v252 = vld [vmem:[#allocation4 + $0x5a8] sm:$0xff]
    %v253 = vld [vmem:[#allocation4 + $0x5b0] sm:$0xff]
    %v254 = vld [vmem:[#allocation4 + $0x5b8] sm:$0xff]
    %v255 = vld [vmem:[#allocation4 + $0x5c0] sm:$0xff]
    %v256 = vld [vmem:[#allocation4 + $0x5c8] sm:$0xff]
    %v257 = vld [vmem:[#allocation4 + $0x5d0] sm:$0xff]
    %v258 = vld [vmem:[#allocation4 + $0x5d8] sm:$0xff]
    %v259 = vld [vmem:[#allocation4 + $0x5e0] sm:$0xff]
    %v260 = vld [vmem:[#allocation4 + $0x5e8] sm:$0xff]
    %v261 = vld [vmem:[#allocation4 + $0x5f0] sm:$0xff]
    %v262 = vld [vmem:[#allocation4 + $0x5f8] sm:$0xff]
    %v263 = vld [vmem:[#allocation4 + $0x600] sm:$0xff]
    %v264 = vld [vmem:[#allocation4 + $0x608] sm:$0xff]
    %v265 = vld [vmem:[#allocation4 + $0x610] sm:$0xff]
    %v266 = vld [vmem:[#allocation4 + $0x618] sm:$0xff]
    %v267 = vld [vmem:[#allocation4 + $0x620] sm:$0xff]
    %v268 = vld [vmem:[#allocation4 + $0x628] sm:$0xff]
    %v269 = vld [vmem:[#allocation4 + $0x630] sm:$0xff]
    %v270 = vld [vmem:[#allocation4 + $0x638] sm:$0xff]
    %v271 = vld [vmem:[#allocation4 + $0x640] sm:$0xff]
    %v272 = vld [vmem:[#allocation4 + $0x648] sm:$0xff]
    %v273 = vld [vmem:[#allocation4 + $0x650] sm:$0xff]
    %v274 = vld [vmem:[#allocation4 + $0x658] sm:$0xff]
    %v275 = vld [vmem:[#allocation4 + $0x660] sm:$0xff]
    %v276 = vld [vmem:[#allocation4 + $0x668] sm:$0xff]
    %v277 = vld [vmem:[#allocation4 + $0x670] sm:$0xff]
    %v278 = vld [vmem:[#allocation4 + $0x678] sm:$0xff]
    %v279 = vld [vmem:[#allocation4 + $0x680] sm:$0xff]
    %v280 = vld [vmem:[#allocation4 + $0x688] sm:$0xff]
    %v281 = vld [vmem:[#allocation4 + $0x690] sm:$0xff]
    %v282 = vld [vmem:[#allocation4 + $0x698] sm:$0xff]
    %v283 = vld [vmem:[#allocation4 + $0x6a0] sm:$0xff]
    %v284 = vld [vmem:[#allocation4 + $0x6a8] sm:$0xff]
    %v285 = vld [vmem:[#allocation4 + $0x6b0] sm:$0xff]
    %v286 = vld [vmem:[#allocation4 + $0x6b8] sm:$0xff]
    %v287 = vld [vmem:[#allocation4 + $0x6c0] sm:$0xff]
    %v288 = vld [vmem:[#allocation4 + $0x6c8] sm:$0xff]
    %v289 = vld [vmem:[#allocation4 + $0x6d0] sm:$0xff]
    %v290 = vld [vmem:[#allocation4 + $0x6d8] sm:$0xff]
    %v291 = vld [vmem:[#allocation4 + $0x6e0] sm:$0xff]
    %v292 = vld [vmem:[#allocation4 + $0x6e8] sm:$0xff]
    %v293 = vld [vmem:[#allocation4 + $0x6f0] sm:$0xff]
    %v294 = vld [vmem:[#allocation4 + $0x6f8] sm:$0xff]
    %v295 = vld [vmem:[#allocation4 + $0x700] sm:$0xff]
    %v296 = vld [vmem:[#allocation4 + $0x708] sm:$0xff]
    %v297 = vld [vmem:[#allocation4 + $0x710] sm:$0xff]
    %v298 = vld [vmem:[#allocation4 + $0x718] sm:$0xff]
    %v299 = vld [vmem:[#allocation4 + $0x720] sm:$0xff]
    %v300 = vld [vmem:[#allocation4 + $0x728] sm:$0xff]
    %v301 = vld [vmem:[#allocation4 + $0x730] sm:$0xff]
    %v302 = vld [vmem:[#allocation4 + $0x738] sm:$0xff]
    %v303 = vld [vmem:[#allocation4 + $0x740] sm:$0xff]
    %v304 = vld [vmem:[#allocation4 + $0x748] sm:$0xff]
    %v305 = vld [vmem:[#allocation4 + $0x750] sm:$0xff]
    %v306 = vld [vmem:[#allocation4 + $0x758] sm:$0xff]
    %v307 = vld [vmem:[#allocation4 + $0x760] sm:$0xff]
    %v308 = vld [vmem:[#allocation4 + $0x768] sm:$0xff]
    %v309 = vld [vmem:[#allocation4 + $0x770] sm:$0xff]
    %v310 = vld [vmem:[#allocation4 + $0x778] sm:$0xff]
    %v311 = vld [vmem:[#allocation4 + $0x780] sm:$0xff]
    %v312 = vld [vmem:[#allocation4 + $0x788] sm:$0xff]
    %v313 = vld [vmem:[#allocation4 + $0x790] sm:$0xff]
    %v314 = vld [vmem:[#allocation4 + $0x798] sm:$0xff]
    %v315 = vld [vmem:[#allocation4 + $0x7a0] sm:$0xff]
    %v316 = vld [vmem:[#allocation4 + $0x7a8] sm:$0xff]
    %v317 = vld [vmem:[#allocation4 + $0x7b0] sm:$0xff]
    %v318 = vld [vmem:[#allocation4 + $0x7b8] sm:$0xff]
    %v319 = vld [vmem:[#allocation4 + $0x7c0] sm:$0xff]
    %v320 = vld [vmem:[#allocation4 + $0x7c8] sm:$0xff]
    %v321 = vld [vmem:[#allocation4 + $0x7d0] sm:$0xff]
    %v322 = vld [vmem:[#allocation4 + $0x7d8] sm:$0xff]
    %v323 = vld [vmem:[#allocation4 + $0x7e0] sm:$0xff]
    %v324 = vld [vmem:[#allocation4 + $0x7e8] sm:$0xff]
    %v325 = vld [vmem:[#allocation4 + $0x7f0] sm:$0xff]
    %v326 = vld [vmem:[#allocation4 + $0x7f8] sm:$0xff]
    %v327 = vld [vmem:[#allocation4 + $0x800] sm:$0xff]
    %v328 = vld [vmem:[#allocation4 + $0x808] sm:$0xff]
    %v329 = vld [vmem:[#allocation4 + $0x810] sm:$0xff]
    %v330 = vld [vmem:[#allocation4 + $0x818] sm:$0xff]
    %v331 = vld [vmem:[#allocation4 + $0x820] sm:$0xff]
    %v332 = vld [vmem:[#allocation4 + $0x828] sm:$0xff]
    %v333 = vld [vmem:[#allocation4 + $0x830] sm:$0xff]
    %v334 = vld [vmem:[#allocation4 + $0x838] sm:$0xff]
    %v335 = vld [vmem:[#allocation4 + $0x840] sm:$0xff]
    %v336 = vld [vmem:[#allocation4 + $0x848] sm:$0xff]
    %v337 = vld [vmem:[#allocation4 + $0x850] sm:$0xff]
    %v338 = vld [vmem:[#allocation4 + $0x858] sm:$0xff]
    %v339 = vld [vmem:[#allocation4 + $0x860] sm:$0xff]
    %v340 = vld [vmem:[#allocation4 + $0x868] sm:$0xff]
    %v341 = vld [vmem:[#allocation4 + $0x870] sm:$0xff]
    %v342 = vld [vmem:[#allocation4 + $0x878] sm:$0xff]
    %v343 = vld [vmem:[#allocation4 + $0x880] sm:$0xff]
    %v344 = vld [vmem:[#allocation4 + $0x888] sm:$0xff]
    %v345 = vld [vmem:[#allocation4 + $0x890] sm:$0xff]
    %v346 = vld [vmem:[#allocation4 + $0x898] sm:$0xff]
    %v347 = vld [vmem:[#allocation4 + $0x8a0] sm:$0xff]
    %v348 = vld [vmem:[#allocation4 + $0x8a8] sm:$0xff]
    %v349 = vld [vmem:[#allocation4 + $0x8b0] sm:$0xff]
    %v350 = vld [vmem:[#allocation4 + $0x8b8] sm:$0xff]
    %v351 = vld [vmem:[#allocation4 + $0x8c0] sm:$0xff]
    %v352 = vld [vmem:[#allocation4 + $0x8c8] sm:$0xff]
    %v353 = vld [vmem:[#allocation4 + $0x8d0] sm:$0xff]
    %v354 = vld [vmem:[#allocation4 + $0x8d8] sm:$0xff]
    %v355 = vld [vmem:[#allocation4 + $0x8e0] sm:$0xff]
    %v356 = vld [vmem:[#allocation4 + $0x8e8] sm:$0xff]
    %v357 = vld [vmem:[#allocation4 + $0x8f0] sm:$0xff]
    %v358 = vld [vmem:[#allocation4 + $0x8f8] sm:$0xff]
    %v359 = vld [vmem:[#allocation4 + $0x900] sm:$0xff]
    %v360 = vld [vmem:[#allocation4 + $0x908] sm:$0xff]
    %v361 = vld [vmem:[#allocation4 + $0x910] sm:$0xff]
    %v362 = vld [vmem:[#allocation4 + $0x918] sm:$0xff]
    %v363 = vld [vmem:[#allocation4 + $0x920] sm:$0xff]
    %v364 = vld [vmem:[#allocation4 + $0x928] sm:$0xff]
    %v365 = vld [vmem:[#allocation4 + $0x930] sm:$0xff]
    %v366 = vld [vmem:[#allocation4 + $0x938] sm:$0xff]
    %v367 = vld [vmem:[#allocation4 + $0x940] sm:$0xff]
    %v368 = vld [vmem:[#allocation4 + $0x948] sm:$0xff]
    %v369 = vld [vmem:[#allocation4 + $0x950] sm:$0xff]
    %v370 = vld [vmem:[#allocation4 + $0x958] sm:$0xff]
    %v371 = vld [vmem:[#allocation4 + $0x960] sm:$0xff]
    %v372 = vld [vmem:[#allocation4 + $0x968] sm:$0xff]
    %v373 = vld [vmem:[#allocation4 + $0x970] sm:$0xff]
    %v374 = vld [vmem:[#allocation4 + $0x978] sm:$0xff]
    %v375 = vld [vmem:[#allocation4 + $0x980] sm:$0xf]
    %v376 = vld [vmem:[#allocation4 + $0x988] sm:$0xf]
    %v377 = vld [vmem:[#allocation4 + $0x990] sm:$0xf]
    %v378 = vld [vmem:[#allocation4 + $0x998] sm:$0xf]
    %v379 = vld [vmem:[#allocation6] sm:$0xf]
    %v381 = vlaneseq
    %v382 = vshrl.u32 %v381, 7
    %v383 = vsub.s32 0, %v382
    %v384 = vrot.slane %v379, %v383
    %v385 = vlaneseq
    %v386 = vshrl.u32 %v385, 7
    %v387 = vsub.s32 1, %v386
    %v388 = vrot.slane %v379, %v387
    %v389 = vlaneseq
    %v390 = vshrl.u32 %v389, 7
    %v391 = vsub.s32 2, %v390
    %v392 = vrot.slane %v379, %v391
    %v393 = vlaneseq
    %v394 = vshrl.u32 %v393, 7
    %v395 = vsub.s32 3, %v394
    %v396 = vrot.slane %v379, %v395
    %vm401 = vcmask 818176
    %v403 = vsel %vm401, %v70, 0
    %vm405 = vcmask 1043456
    %v407 = vsel %vm405, %v375, 0
    %v410 = vsel %vm405, %v376, 0
    %v413 = vsel %vm405, %v377, 0
    %v416 = vsel %vm405, %v378, 0
    %418 = vmatprep.subr.mxu0 %v72
    %419 = vmatpush1.msra.mxu0 %v71
    %420 = vmatprep.subr.mxu0 %v76
    %421 = vmatpush1.msra.mxu0 %v75
    %422 = vmatprep.subr.mxu0 %v80
    %423 = vmatpush1.msra.mxu0 %v79
    %424 = vmatprep.subr.mxu0 %v84
    %425 = vmatpush1.msra.mxu0 %v83
    %426 = vmatprep.subr.mxu0 %v88
    %427 = vmatpush1.msra.mxu0 %v87
    %428 = vmatprep.subr.mxu0 %v92
    %429 = vmatpush1.msra.mxu0 %v91
    %430 = vmatprep.subr.mxu0 %v96
    %431 = vmatpush1.msra.mxu0 %v95
    %432 = vmatprep.subr.mxu0 %v100
    %433 = vmatpush1.msra.mxu0 %v99
    %434 = vmatprep.subr.mxu0 %v104
    %435 = vmatpush1.msra.mxu0 %v103
    %436 = vmatprep.subr.mxu0 %v108
    %437 = vmatpush1.msra.mxu0 %v107
    %438 = vmatprep.subr.mxu0 %v112
    %439 = vmatpush1.msra.mxu0 %v111
    %440 = vmatprep.subr.mxu0 %v116
    %441 = vmatpush1.msra.mxu0 %v115
    %442 = vmatprep.subr.mxu0 %v120
    %443 = vmatpush1.msra.mxu0 %v119
    %444 = vmatprep.subr.mxu0 %v124
    %445 = vmatpush1.msra.mxu0 %v123
    %446 = vmatprep.subr.mxu0 %v128
    %447 = vmatpush1.msra.mxu0 %v127
    %448 = vmatprep.subr.mxu0 %v132
    %449 = vmatpush1.msra.mxu0 %v131
    %450 = vmatprep.subr.mxu0 %v136
    %451 = vmatpush1.msra.mxu0 %v135
    %452 = vmatprep.subr.mxu0 %v140
    %453 = vmatpush1.msra.mxu0 %v139
    %454 = vmatprep.subr.mxu0 %v144
    %455 = vmatpush1.msra.mxu0 %v143
    %456 = vmatprep.subr.mxu0 %v148
    %457 = vmatpush1.msra.mxu0 %v147
    %458 = vmatprep.subr.mxu0 %v152
    %459 = vmatpush1.msra.mxu0 %v151
    %460 = vmatprep.subr.mxu0 %v156
    %461 = vmatpush1.msra.mxu0 %v155
    %462 = vmatprep.subr.mxu0 %v160
    %463 = vmatpush1.msra.mxu0 %v159
    %464 = vmatprep.subr.mxu0 %v164
    %465 = vmatpush1.msra.mxu0 %v163
    %466 = vmatprep.subr.mxu0 %v168
    %467 = vmatpush1.msra.mxu0 %v167
    %468 = vmatprep.subr.mxu0 %v172
    %469 = vmatpush1.msra.mxu0 %v171
    %470 = vmatprep.subr.mxu0 %v176
    %471 = vmatpush1.msra.mxu0 %v175
    %472 = vmatprep.subr.mxu0 %v180
    %473 = vmatpush1.msra.mxu0 %v179
    %474 = vmatprep.subr.mxu0 %v184
    %475 = vmatpush1.msra.mxu0 %v183
    %476 = vmatprep.subr.mxu0 %v188
    %477 = vmatpush1.msra.mxu0 %v187
    %478 = vmatprep.subr.mxu0 %v192
    %479 = vmatpush1.msra.mxu0 %v191
    %480 = vmatprep.subr.mxu0 %v196
    %481 = vmatpush1.msra.mxu0 %v195
    %482 = vmatprep.mubr.f32.mxu0 %v67
    %483 = vmatmul.mubr.f32.gmra.mrb[0].mxu0 %v66
    %v484 = vpop.f32.mrb[0].mxu0
    %v485 = vadd.f32 %v384, %v484
    %v486 = vpop.f32.mrb[0].mxu0
    %v487 = vadd.f32 %v388, %v486
    %488 = vdwg.mxu0
    %489 = vmatprep.subr.mxu0 %v200
    %490 = vmatpush1.msra.mxu0 %v199
    %491 = vmatprep.subr.mxu0 %v204
    %492 = vmatpush1.msra.mxu0 %v203
    %493 = vmatprep.subr.mxu0 %v208
    %494 = vmatpush1.msra.mxu0 %v207
    %495 = vmatprep.subr.mxu0 %v212
    %496 = vmatpush1.msra.mxu0 %v211
    %497 = vmatprep.subr.mxu0 %v216
    %498 = vmatpush1.msra.mxu0 %v215
    %499 = vmatprep.subr.mxu0 %v220
    %500 = vmatpush1.msra.mxu0 %v219
    %501 = vmatprep.subr.mxu0 %v224
    %502 = vmatpush1.msra.mxu0 %v223
    %503 = vmatprep.subr.mxu0 %v228
    %504 = vmatpush1.msra.mxu0 %v227
    %505 = vmatprep.subr.mxu0 %v232
    %506 = vmatpush1.msra.mxu0 %v231
    %507 = vmatprep.subr.mxu0 %v236
    %508 = vmatpush1.msra.mxu0 %v235
    %509 = vmatprep.subr.mxu0 %v240
    %510 = vmatpush1.msra.mxu0 %v239
    %511 = vmatprep.subr.mxu0 %v244
    %512 = vmatpush1.msra.mxu0 %v243
    %513 = vmatprep.subr.mxu0 %v248
    %514 = vmatpush1.msra.mxu0 %v247
    %515 = vmatprep.subr.mxu0 %v252
    %516 = vmatpush1.msra.mxu0 %v251
    %517 = vmatprep.subr.mxu0 %v256
    %518 = vmatpush1.msra.mxu0 %v255
    %519 = vmatprep.subr.mxu0 %v260
    %520 = vmatpush1.msra.mxu0 %v259
    %521 = vmatprep.subr.mxu0 %v264
    %522 = vmatpush1.msra.mxu0 %v263
    %523 = vmatprep.subr.mxu0 %v268
    %524 = vmatpush1.msra.mxu0 %v267
    %525 = vmatprep.subr.mxu0 %v272
    %526 = vmatpush1.msra.mxu0 %v271
    %527 = vmatprep.subr.mxu0 %v276
    %528 = vmatpush1.msra.mxu0 %v275
    %529 = vmatprep.subr.mxu0 %v280
    %530 = vmatpush1.msra.mxu0 %v279
    %531 = vmatprep.subr.mxu0 %v284
    %532 = vmatpush1.msra.mxu0 %v283
    %533 = vmatprep.subr.mxu0 %v288
    %534 = vmatpush1.msra.mxu0 %v287
    %535 = vmatprep.subr.mxu0 %v292
    %536 = vmatpush1.msra.mxu0 %v291
    %537 = vmatprep.subr.mxu0 %v296
    %538 = vmatpush1.msra.mxu0 %v295
    %539 = vmatprep.subr.mxu0 %v300
    %540 = vmatpush1.msra.mxu0 %v299
    %541 = vmatprep.subr.mxu0 %v304
    %542 = vmatpush1.msra.mxu0 %v303
    %543 = vmatprep.subr.mxu0 %v308
    %544 = vmatpush1.msra.mxu0 %v307
    %545 = vmatprep.subr.mxu0 %v312
    %546 = vmatpush1.msra.mxu0 %v311
    %547 = vmatprep.subr.mxu0 %v316
    %548 = vmatpush1.msra.mxu0 %v315
    %549 = vmatprep.subr.mxu0 %v320
    %550 = vmatpush1.msra.mxu0 %v319
    %551 = vmatprep.subr.mxu0 %v324
    %552 = vmatpush1.msra.mxu0 %v323
    %553 = vmatprep.mubr.f32.mxu0 %v69
    %554 = vmatmul.mubr.f32.gmra.mrb[0].mxu0 %v68
    %v555 = vpop.f32.mrb[0].mxu0
    %v556 = vadd.f32 %v485, %v555
    %v557 = vpop.f32.mrb[0].mxu0
    %v558 = vadd.f32 %v487, %v557
    %559 = vdwg.mxu0
    %560 = vmatprep.subr.mxu0 %v328
    %561 = vmatpush1.msra.mxu0 %v327
    %562 = vmatprep.subr.mxu0 %v332
    %563 = vmatpush1.msra.mxu0 %v331
    %564 = vmatprep.subr.mxu0 %v336
    %565 = vmatpush1.msra.mxu0 %v335
    %566 = vmatprep.subr.mxu0 %v340
    %567 = vmatpush1.msra.mxu0 %v339
    %568 = vmatprep.subr.mxu0 %v344
    %569 = vmatpush1.msra.mxu0 %v343
    %570 = vmatprep.subr.mxu0 %v348
    %571 = vmatpush1.msra.mxu0 %v347
    %572 = vmatprep.subr.mxu0 %v352
    %573 = vmatpush1.msra.mxu0 %v351
    %574 = vmatprep.subr.mxu0 %v356
    %575 = vmatpush1.msra.mxu0 %v355
    %576 = vmatprep.subr.mxu0 %v360
    %577 = vmatpush1.msra.mxu0 %v359
    %578 = vmatprep.subr.mxu0 %v364
    %579 = vmatpush1.msra.mxu0 %v363
    %580 = vmatprep.subr.mxu0 %v368
    %581 = vmatpush1.msra.mxu0 %v367
    %582 = vmatprep.subr.mxu0 %v372
    %583 = vmatpush1.msra.mxu0 %v371
    %584 = vmatprep.subr.mxu0 %v410
    %585 = vmatpush1.msra.mxu0 %v407
    %586 = vmatprep.subr.mxu0 0.0
    %587 = vmatpush1.msra.mxu0 0.0
    %588 = vmatprep.subr.mxu0 0.0
    %589 = vmatpush1.msra.mxu0 0.0
    %590 = vmatprep.subr.mxu0 0.0
    %591 = vmatpush1.msra.mxu0 0.0
    %592 = vmatprep.subr.mxu0 0.0
    %593 = vmatpush1.msra.mxu0 0.0
    %594 = vmatprep.subr.mxu0 0.0
    %595 = vmatpush1.msra.mxu0 0.0
    %596 = vmatprep.subr.mxu0 0.0
    %597 = vmatpush1.msra.mxu0 0.0
    %598 = vmatprep.subr.mxu0 0.0
    %599 = vmatpush1.msra.mxu0 0.0
    %600 = vmatprep.subr.mxu0 0.0
    %601 = vmatpush1.msra.mxu0 0.0
    %602 = vmatprep.subr.mxu0 0.0
    %603 = vmatpush1.msra.mxu0 0.0
    %604 = vmatprep.subr.mxu0 0.0
    %605 = vmatpush1.msra.mxu0 0.0
    %606 = vmatprep.subr.mxu0 0.0
    %607 = vmatpush1.msra.mxu0 0.0
    %608 = vmatprep.subr.mxu0 0.0
    %609 = vmatpush1.msra.mxu0 0.0
    %610 = vmatprep.subr.mxu0 0.0
    %611 = vmatpush1.msra.mxu0 0.0
    %612 = vmatprep.subr.mxu0 0.0
    %613 = vmatpush1.msra.mxu0 0.0
    %614 = vmatprep.subr.mxu0 0.0
    %615 = vmatpush1.msra.mxu0 0.0
    %616 = vmatprep.subr.mxu0 0.0
    %617 = vmatpush1.msra.mxu0 0.0
    %618 = vmatprep.subr.mxu0 0.0
    %619 = vmatpush1.msra.mxu0 0.0
    %620 = vmatprep.subr.mxu0 0.0
    %621 = vmatpush1.msra.mxu0 0.0
    %622 = vmatprep.subr.mxu0 0.0
    %623 = vmatpush1.msra.mxu0 0.0
    %624 = vmatprep.mubr.f32.mxu0 0.0
    %625 = vmatmul.mubr.f32.gmra.mrb[0].mxu0 %v403
    %v626 = vpop.f32.mrb[0].mxu0
    %v627 = vadd.f32 %v556, %v626
    %v628 = vpop.f32.mrb[0].mxu0
    %v629 = vadd.f32 %v558, %v628
    %630 = vdwg.mxu0
    %631 = vmatprep.subr.mxu0 %v74
    %632 = vmatpush1.msra.mxu0 %v73
    %633 = vmatprep.subr.mxu0 %v78
    %634 = vmatpush1.msra.mxu0 %v77
    %635 = vmatprep.subr.mxu0 %v82
    %636 = vmatpush1.msra.mxu0 %v81
    %637 = vmatprep.subr.mxu0 %v86
    %638 = vmatpush1.msra.mxu0 %v85
    %639 = vmatprep.subr.mxu0 %v90
    %640 = vmatpush1.msra.mxu0 %v89
    %641 = vmatprep.subr.mxu0 %v94
    %642 = vmatpush1.msra.mxu0 %v93
    %643 = vmatprep.subr.mxu0 %v98
    %644 = vmatpush1.msra.mxu0 %v97
    %645 = vmatprep.subr.mxu0 %v102
    %646 = vmatpush1.msra.mxu0 %v101
    %647 = vmatprep.subr.mxu0 %v106
    %648 = vmatpush1.msra.mxu0 %v105
    %649 = vmatprep.subr.mxu0 %v110
    %650 = vmatpush1.msra.mxu0 %v109
    %651 = vmatprep.subr.mxu0 %v114
    %652 = vmatpush1.msra.mxu0 %v113
    %653 = vmatprep.subr.mxu0 %v118
    %654 = vmatpush1.msra.mxu0 %v117
    %655 = vmatprep.subr.mxu0 %v122
    %656 = vmatpush1.msra.mxu0 %v121
    %657 = vmatprep.subr.mxu0 %v126
    %658 = vmatpush1.msra.mxu0 %v125
    %659 = vmatprep.subr.mxu0 %v130
    %660 = vmatpush1.msra.mxu0 %v129
    %661 = vmatprep.subr.mxu0 %v134
    %662 = vmatpush1.msra.mxu0 %v133
    %663 = vmatprep.subr.mxu0 %v138
    %664 = vmatpush1.msra.mxu0 %v137
    %665 = vmatprep.subr.mxu0 %v142
    %666 = vmatpush1.msra.mxu0 %v141
    %667 = vmatprep.subr.mxu0 %v146
    %668 = vmatpush1.msra.mxu0 %v145
    %669 = vmatprep.subr.mxu0 %v150
    %670 = vmatpush1.msra.mxu0 %v149
    %671 = vmatprep.subr.mxu0 %v154
    %672 = vmatpush1.msra.mxu0 %v153
    %673 = vmatprep.subr.mxu0 %v158
    %674 = vmatpush1.msra.mxu0 %v157
    %675 = vmatprep.subr.mxu0 %v162
    %676 = vmatpush1.msra.mxu0 %v161
    %677 = vmatprep.subr.mxu0 %v166
    %678 = vmatpush1.msra.mxu0 %v165
    %679 = vmatprep.subr.mxu0 %v170
    %680 = vmatpush1.msra.mxu0 %v169
    %681 = vmatprep.subr.mxu0 %v174
    %682 = vmatpush1.msra.mxu0 %v173
    %683 = vmatprep.subr.mxu0 %v178
    %684 = vmatpush1.msra.mxu0 %v177
    %685 = vmatprep.subr.mxu0 %v182
    %686 = vmatpush1.msra.mxu0 %v181
    %687 = vmatprep.subr.mxu0 %v186
    %688 = vmatpush1.msra.mxu0 %v185
    %689 = vmatprep.subr.mxu0 %v190
    %690 = vmatpush1.msra.mxu0 %v189
    %691 = vmatprep.subr.mxu0 %v194
    %692 = vmatpush1.msra.mxu0 %v193
    %693 = vmatprep.subr.mxu0 %v198
    %694 = vmatpush1.msra.mxu0 %v197
    %695 = vmatprep.mubr.f32.mxu0 %v67
    %696 = vmatmul.mubr.f32.gmra.mrb[0].mxu0 %v66
    %v697 = vpop.f32.mrb[0].mxu0
    %v698 = vadd.f32 %v392, %v697
    %v699 = vpop.f32.mrb[0].mxu0
    %v700 = vadd.f32 %v396, %v699
    %701 = vdwg.mxu0
    %702 = vmatprep.subr.mxu0 %v202
    %703 = vmatpush1.msra.mxu0 %v201
    %704 = vmatprep.subr.mxu0 %v206
    %705 = vmatpush1.msra.mxu0 %v205
    %706 = vmatprep.subr.mxu0 %v210
    %707 = vmatpush1.msra.mxu0 %v209
    %708 = vmatprep.subr.mxu0 %v214
    %709 = vmatpush1.msra.mxu0 %v213
    %710 = vmatprep.subr.mxu0 %v218
    %711 = vmatpush1.msra.mxu0 %v217
    %712 = vmatprep.subr.mxu0 %v222
    %713 = vmatpush1.msra.mxu0 %v221
    %714 = vmatprep.subr.mxu0 %v226
    %715 = vmatpush1.msra.mxu0 %v225
    %716 = vmatprep.subr.mxu0 %v230
    %717 = vmatpush1.msra.mxu0 %v229
    %718 = vmatprep.subr.mxu0 %v234
    %719 = vmatpush1.msra.mxu0 %v233
    %720 = vmatprep.subr.mxu0 %v238
    %721 = vmatpush1.msra.mxu0 %v237
    %722 = vmatprep.subr.mxu0 %v242
    %723 = vmatpush1.msra.mxu0 %v241
    %724 = vmatprep.subr.mxu0 %v246
    %725 = vmatpush1.msra.mxu0 %v245
    %726 = vmatprep.subr.mxu0 %v250
    %727 = vmatpush1.msra.mxu0 %v249
    %728 = vmatprep.subr.mxu0 %v254
    %729 = vmatpush1.msra.mxu0 %v253
    %730 = vmatprep.subr.mxu0 %v258
    %731 = vmatpush1.msra.mxu0 %v257
    %732 = vmatprep.subr.mxu0 %v262
    %733 = vmatpush1.msra.mxu0 %v261
    %734 = vmatprep.subr.mxu0 %v266
    %735 = vmatpush1.msra.mxu0 %v265
    %736 = vmatprep.subr.mxu0 %v270
    %737 = vmatpush1.msra.mxu0 %v269
    %738 = vmatprep.subr.mxu0 %v274
    %739 = vmatpush1.msra.mxu0 %v273
    %740 = vmatprep.subr.mxu0 %v278
    %741 = vmatpush1.msra.mxu0 %v277
    %742 = vmatprep.subr.mxu0 %v282
    %743 = vmatpush1.msra.mxu0 %v281
    %744 = vmatprep.subr.mxu0 %v286
    %745 = vmatpush1.msra.mxu0 %v285
    %746 = vmatprep.subr.mxu0 %v290
    %747 = vmatpush1.msra.mxu0 %v289
    %748 = vmatprep.subr.mxu0 %v294
    %749 = vmatpush1.msra.mxu0 %v293
    %750 = vmatprep.subr.mxu0 %v298
    %751 = vmatpush1.msra.mxu0 %v297
    %752 = vmatprep.subr.mxu0 %v302
    %753 = vmatpush1.msra.mxu0 %v301
    %754 = vmatprep.subr.mxu0 %v306
    %755 = vmatpush1.msra.mxu0 %v305
    %756 = vmatprep.subr.mxu0 %v310
    %757 = vmatpush1.msra.mxu0 %v309
    %758 = vmatprep.subr.mxu0 %v314
    %759 = vmatpush1.msra.mxu0 %v313
    %760 = vmatprep.subr.mxu0 %v318
    %761 = vmatpush1.msra.mxu0 %v317
    %762 = vmatprep.subr.mxu0 %v322
    %763 = vmatpush1.msra.mxu0 %v321
    %764 = vmatprep.subr.mxu0 %v326
    %765 = vmatpush1.msra.mxu0 %v325
    %766 = vmatprep.mubr.f32.mxu0 %v69
    %767 = vmatmul.mubr.f32.gmra.mrb[0].mxu0 %v68
    %v768 = vpop.f32.mrb[0].mxu0
    %v769 = vadd.f32 %v698, %v768
    %v770 = vpop.f32.mrb[0].mxu0
    %v771 = vadd.f32 %v700, %v770
    %772 = vdwg.mxu0
    %773 = vmatprep.subr.mxu0 %v330
    %774 = vmatpush1.msra.mxu0 %v329
    %775 = vmatprep.subr.mxu0 %v334
    %776 = vmatpush1.msra.mxu0 %v333
    %777 = vmatprep.subr.mxu0 %v338
    %778 = vmatpush1.msra.mxu0 %v337
    %779 = vmatprep.subr.mxu0 %v342
    %780 = vmatpush1.msra.mxu0 %v341
    %781 = vmatprep.subr.mxu0 %v346
    %782 = vmatpush1.msra.mxu0 %v345
    %783 = vmatprep.subr.mxu0 %v350
    %784 = vmatpush1.msra.mxu0 %v349
    %785 = vmatprep.subr.mxu0 %v354
    %786 = vmatpush1.msra.mxu0 %v353
    %787 = vmatprep.subr.mxu0 %v358
    %788 = vmatpush1.msra.mxu0 %v357
    %789 = vmatprep.subr.mxu0 %v362
    %790 = vmatpush1.msra.mxu0 %v361
    %791 = vmatprep.subr.mxu0 %v366
    %792 = vmatpush1.msra.mxu0 %v365
    %793 = vmatprep.subr.mxu0 %v370
    %794 = vmatpush1.msra.mxu0 %v369
    %795 = vmatprep.subr.mxu0 %v374
    %796 = vmatpush1.msra.mxu0 %v373
    %797 = vmatprep.subr.mxu0 %v416
    %798 = vmatpush1.msra.mxu0 %v413
    %799 = vmatprep.subr.mxu0 0.0
    %800 = vmatpush1.msra.mxu0 0.0
    %801 = vmatprep.subr.mxu0 0.0
    %802 = vmatpush1.msra.mxu0 0.0
    %803 = vmatprep.subr.mxu0 0.0
    %804 = vmatpush1.msra.mxu0 0.0
    %805 = vmatprep.subr.mxu0 0.0
    %806 = vmatpush1.msra.mxu0 0.0
    %807 = vmatprep.subr.mxu0 0.0
    %808 = vmatpush1.msra.mxu0 0.0
    %809 = vmatprep.subr.mxu0 0.0
    %810 = vmatpush1.msra.mxu0 0.0
    %811 = vmatprep.subr.mxu0 0.0
    %812 = vmatpush1.msra.mxu0 0.0
    %813 = vmatprep.subr.mxu0 0.0
    %814 = vmatpush1.msra.mxu0 0.0
    %815 = vmatprep.subr.mxu0 0.0
    %816 = vmatpush1.msra.mxu0 0.0
    %817 = vmatprep.subr.mxu0 0.0
    %818 = vmatpush1.msra.mxu0 0.0
    %819 = vmatprep.subr.mxu0 0.0
    %820 = vmatpush1.msra.mxu0 0.0
    %821 = vmatprep.subr.mxu0 0.0
    %822 = vmatpush1.msra.mxu0 0.0
    %823 = vmatprep.subr.mxu0 0.0
    %824 = vmatpush1.msra.mxu0 0.0
    %825 = vmatprep.subr.mxu0 0.0
    %826 = vmatpush1.msra.mxu0 0.0
    %827 = vmatprep.subr.mxu0 0.0
    %828 = vmatpush1.msra.mxu0 0.0
    %829 = vmatprep.subr.mxu0 0.0
    %830 = vmatpush1.msra.mxu0 0.0
    %831 = vmatprep.subr.mxu0 0.0
    %832 = vmatpush1.msra.mxu0 0.0
    %833 = vmatprep.subr.mxu0 0.0
    %834 = vmatpush1.msra.mxu0 0.0
    %835 = vmatprep.subr.mxu0 0.0
    %836 = vmatpush1.msra.mxu0 0.0
    %837 = vmatprep.mubr.f32.mxu0 0.0
    %838 = vmatmul.mubr.f32.gmra.mrb[0].mxu0 %v403
    %v839 = vpop.f32.mrb[0].mxu0
    %v840 = vadd.f32 %v769, %v839
    %v841 = vpop.f32.mrb[0].mxu0
    %v842 = vadd.f32 %v771, %v841
    %843 = vdwg.mxu0
    %v844 = vmax.f32 %v627, 0.0
    %v845 = vmax.f32 %v629, 0.0
    %v846 = vmax.f32 %v840, 0.0
    %v847 = vmax.f32 %v842, 0.0
    %v848 = vld [vmem:[#allocation7] sm:$0xf]
    %v850 = vlaneseq
    %v851 = vshrl.u32 %v850, 7
    %v852 = vsub.s32 0, %v851
    %v853 = vrot.slane %v848, %v852
    %v854 = vlaneseq
    %v855 = vshrl.u32 %v854, 7
    %v856 = vsub.s32 1, %v855
    %v857 = vrot.slane %v848, %v856
    %v858 = vlaneseq
    %v859 = vshrl.u32 %v858, 7
    %v860 = vsub.s32 2, %v859
    %v861 = vrot.slane %v848, %v860
    %v862 = vlaneseq
    %v863 = vshrl.u32 %v862, 7
    %v864 = vsub.s32 3, %v863
    %v865 = vrot.slane %v848, %v864
    %v870 = vmul.f32 %v844, %v853
    %v871 = vmul.f32 %v845, %v857
    %v872 = vmul.f32 %v846, %v861
    %v873 = vmul.f32 %v847, %v865
    %v874 = vadd.f32 %v870, %v871
    %v875 = vadd.f32 %v874, %v872
    %v876 = vadd.f32 %v875, %v873
    %877 = vadd.xlane.f32.xlu0 %v876
    %v878 = vpop.xlane.xlu0 %877
    %vm879 = vcmask 7168
    %880 = vst.msk [vmem:[%s4] sm:$0xff] %vm879, %v878
    // Predicated region
    $region34: #{tpu_custom_call.1} parent=1 // pred_check
      _
    $region35: #{tpu_custom_call.1} parent=1 // pred_check_branch
      %882 = sbr.rel (0) target = $region37
    $region36: #{tpu_custom_call.1} parent=1 // pred_region
      _
    $region37: #{tpu_custom_call.1} parent=1 // pred_fallthru
      _
    // Predicated region
    $region38: #{tpu_custom_call.1} parent=1 // pred_check
      _
    $region39: #{tpu_custom_call.1} parent=1 // pred_check_branch
      %884 = sbr.rel (0) target = $region41
    $region40: #{tpu_custom_call.1} parent=1 // pred_region
      _
    $region41: #{tpu_custom_call.1} parent=1 // pred_fallthru
      _
    %885 = vsyncpa [#allocation3], 1
    %886 = vsyncpa [#allocation5], 1
    %887 = vsyncpa [#allocation8], 1

</llo_original>
